<compile_context>
chip_gen: v6e
topology: v6e:2x2x1
jax: 0.10.0
libtpu: 0.0.40
codegen_flags: <defaults>
</compile_context>

<pallas_src>
import math
import jax
import jax.numpy as jnp
from jax.experimental import pallas as pl
from jax.experimental.pallas import tpu as pltpu


def to_2tuple(v):
    if isinstance(v, (tuple, list)):
        assert len(v) == 2
        return tuple(v)
    return (v, v)


def _round_up(x, m):
    return ((x + m - 1) // m) * m


def _sublane_multiple(dtype):
    itemsize = jnp.dtype(dtype).itemsize
    return 8 * max(1, 4 // max(itemsize, 1))   # f32->8, bf16->16, int8->32


def _vmem_capacity_bytes():
    try:
        return int(pltpu.get_tpu_info().vmem_capacity_bytes)
    except Exception:
        return 64 * 1024 * 1024  # conservative: v7x per-TensorCore VMEM


def _choose_tile(m, hw_in, hw_out, itemsize, sub, budget_bytes,
                 min_steps=4, max_rows=512):
    """Rows per block: multiple of the sublane pack, sized from the *physical*
    (sublane,128)-padded footprint, capped so the grid keeps >= min_steps
    steps when M allows it and never exceeds max_rows."""
    lanes_in = _round_up(hw_in, 128)
    lanes_out = _round_up(hw_out, 128)
    # Triple-buffered input + double-buffered output: upper bound on live VMEM.
    per_row_bytes = (3 * lanes_in + 2 * lanes_out) * itemsize
    rows_by_budget = max(sub, (budget_bytes // per_row_bytes) // sub * sub)
    cap = _round_up(max(1, -(-m // min_steps)), sub)      # >= min_steps steps
    cap = min(cap, _round_up(max_rows, sub), _round_up(m, sub))
    cap = max(cap, sub)
    return min(rows_by_budget, cap)


def _make_pad_kernel(top, left, h, w, h_out, w_out):
    """Kernel: x_ref (tm, H*W) -> o_ref (tm, H_out*W_out), zero-padded copy.
    All offsets/sizes are static Python ints."""
    hw_in = h * w
    total = h_out * w_out
    pad_w = w_out - w

    def kernel(x_ref, o_ref):
        rows = o_ref.shape[0]
        if pad_w == 0:
            # Interior is contiguous in the flattened layout: one full-lane
            # copy; zero only the top/bottom strips (no redundant stores).
            start = top * w_out
            if start > 0:
                o_ref[:, :start] = jnp.zeros((rows, start), o_ref.dtype)
            o_ref[:, start:start + hw_in] = x_ref[...]
            if start + hw_in < total:
                o_ref[:, start + hw_in:] = jnp.zeros(
                    (rows, total - start - hw_in), o_ref.dtype)
        else:
            # One lane-dense whole-block zero fill (unmasked full-lane vst),
            # then place the H interior rows at static offsets.  The interior
            # overwrite is < 2x a cheap full-lane store and stays hidden under
            # the DMA; strip-only zeroing here would need many tiny masked
            # stores instead.
            o_ref[...] = jnp.zeros_like(o_ref)
            for r in range(h):
                dst = (top + r) * w_out + left
                o_ref[:, dst:dst + w] = x_ref[:, r * w:(r + 1) * w]

    return kernel


def _pallas_pad_call(x2, m, tm, n_steps, hw_in, hw_out, kernel, vmem_limit,
                     dtype, input_buffers=None):
    if input_buffers is None:
        in_spec = pl.BlockSpec((tm, hw_in), lambda i: (i, 0))
    else:
        in_spec = pl.BlockSpec((tm, hw_in), lambda i: (i, 0),
                               pipeline_mode=pl.Buffered(input_buffers))
    return pl.pallas_call(
        kernel,
        out_shape=jax.ShapeDtypeStruct((m, hw_out), dtype),
        grid_spec=pltpu.PrefetchScalarGridSpec(
            num_scalar_prefetch=0,
            grid=(n_steps,),
            in_specs=[in_spec],
            out_specs=pl.BlockSpec((tm, hw_out), lambda i: (i, 0)),
        ),
        compiler_params=pltpu.CompilerParams(
            dimension_semantics=("parallel",),
            vmem_limit_bytes=vmem_limit,
        ),
    )(x2)


def _adaptive_pad_pallas(x, pad_h, pad_w, top, left):
    """Zero-pad the last two dims of x by (pad_h, pad_w) with offset (top, left)."""
    orig_shape = x.shape
    h, w = orig_shape[-2], orig_shape[-1]
    h_out, w_out = h + pad_h, w + pad_w
    lead = orig_shape[:-2]

    m = 1
    for d in lead:
        m *= d
    hw_in, hw_out = h * w, h_out * w_out

    itemsize = jnp.dtype(x.dtype).itemsize
    sub = _sublane_multiple(x.dtype)
    capacity = _vmem_capacity_bytes()
    budget = int(0.40 * capacity)        # in+out blocks incl. multi-buffering
    vmem_limit = int(0.50 * capacity)    # headroom for Mosaic internal scratch

    # Degenerate / enormous-plane escape hatch: let XLA do it.
    min_block = 2 * sub * (_round_up(hw_in, 128) + _round_up(hw_out, 128)) * itemsize
    if m == 0 or min_block > budget:
        bottom, right = pad_h - top, pad_w - left
        pads = [(0, 0)] * len(lead) + [(top, bottom), (left, right)]
        return jnp.pad(x, pads)

    tm = _choose_tile(m, hw_in, hw_out, itemsize, sub, budget)
    n_steps = -(-m // tm)

    x2 = x.reshape(m, hw_in)  # contiguous (free) reshape

    kernel = _make_pad_kernel(top, left, h, w, h_out, w_out)
    if n_steps >= 4:
        try:
            out = _pallas_pad_call(x2, m, tm, n_steps, hw_in, hw_out, kernel,
                                   vmem_limit, x.dtype, input_buffers=3)
        except Exception:
            out = _pallas_pad_call(x2, m, tm, n_steps, hw_in, hw_out, kernel,
                                   vmem_limit, x.dtype, input_buffers=None)
    else:
        out = _pallas_pad_call(x2, m, tm, n_steps, hw_in, hw_out, kernel,
                               vmem_limit, x.dtype, input_buffers=None)

    return out.reshape(*lead, h_out, w_out)


class AdaptivePaddingPallas:
    """Pallas equivalent of the PyTorch AdaptivePadding module."""

    def __init__(self, kernel_size=1, stride=1, dilation=1, padding='corner',
                 min_pallas_bytes=1 << 20):
        assert padding in ('same', 'corner')
        self.padding = padding
        self.kernel_size = to_2tuple(kernel_size)
        self.stride = to_2tuple(stride)
        self.dilation = to_2tuple(dilation)
        # Below this input size a standalone pad kernel costs more (launch +
        # extra HBM round trip) than letting XLA fuse jnp.pad into the
        # consumer.  Set to 0 to force the Pallas path.
        self.min_pallas_bytes = min_pallas_bytes

    def get_pad_shape(self, input_shape):
        input_h, input_w = input_shape
        kernel_h, kernel_w = self.kernel_size
        stride_h, stride_w = self.stride
        output_h = math.ceil(input_h / stride_h)
        output_w = math.ceil(input_w / stride_w)
        pad_h = max(
            (output_h - 1) * stride_h + (kernel_h - 1) * self.dilation[0] + 1 - input_h, 0)
        pad_w = max(
            (output_w - 1) * stride_w + (kernel_w - 1) * self.dilation[1] + 1 - input_w, 0)
        return pad_h, pad_w

    def __call__(self, x):
        h, w = x.shape[-2], x.shape[-1]
        pad_h, pad_w = self.get_pad_shape((h, w))
        if pad_h == 0 and pad_w == 0:
            return x  # identity: no kernel launch, matches the PyTorch early-out
        if self.padding == 'corner':
            top, left = 0, 0
        else:  # 'same'
            top, left = pad_h // 2, pad_w // 2
        nbytes = x.size * jnp.dtype(x.dtype).itemsize
        if nbytes < self.min_pallas_bytes:
            bottom, right = pad_h - top, pad_w - left
            pads = [(0, 0)] * (x.ndim - 2) + [(top, bottom), (left, right)]
            return jnp.pad(x, pads)
        return _adaptive_pad_pallas(x, pad_h, pad_w, top, left)


if __name__ == "__main__":
    key = jax.random.PRNGKey(0)
    k1, k2, k3, k4, k5 = jax.random.split(key, 5)

    # Force the Pallas path for the small demo tensors.
    pad_corner = AdaptivePaddingPallas(kernel_size=16, stride=16, dilation=1,
                                       padding='corner', min_pallas_bytes=0)
    pad_same = AdaptivePaddingPallas(kernel_size=16, stride=16, dilation=1,
                                     padding='same', min_pallas_bytes=0)
    pad_corner8 = AdaptivePaddingPallas(kernel_size=8, stride=8, dilation=1,
                                        padding='corner', min_pallas_bytes=0)

    # 1) 'corner': (8,4,15,17) -> (8,4,16,32); M=32 -> 4 grid steps (pipelined).
    x1 = jax.random.normal(k1, (8, 4, 15, 17), jnp.float32)
    o1 = jax.block_until_ready(pad_corner(x1))
    assert o1.shape == (8, 4, 16, 32), o1.shape
    assert jnp.array_equal(o1, jnp.pad(x1, ((0, 0), (0, 0), (0, 1), (0, 15)))), \
        "corner-mode mismatch vs reference"

    # 2) 'same': (2,5,15,17) -> (2,5,16,32); M=10 -> ragged last block.
    x2 = jax.random.normal(k2, (2, 5, 15, 17), jnp.float32)
    o2 = jax.block_until_ready(pad_same(x2))
    assert o2.shape == (2, 5, 16, 32), o2.shape
    assert jnp.array_equal(o2, jnp.pad(x2, ((0, 0), (0, 0), (0, 1), (7, 8)))), \
        "same-mode mismatch vs reference"

    # 3) pad_w == 0 (contiguous interior + strip zeroing): (2,4,15,32), k=s=8.
    x3 = jax.random.normal(k3, (2, 4, 15, 32), jnp.float32)
    o3 = jax.block_until_ready(pad_corner8(x3))
    assert o3.shape == (2, 4, 16, 32), o3.shape
    assert jnp.array_equal(o3, jnp.pad(x3, ((0, 0), (0, 0), (0, 1), (0, 0)))), \
        "pad_w==0 path mismatch vs reference"

    # 4) bf16: exercises the 16-row sublane packing in the tile chooser.
    x4 = jax.random.normal(k4, (4, 4, 15, 17), jnp.bfloat16)
    o4 = jax.block_until_ready(pad_corner(x4))
    assert o4.shape == (4, 4, 16, 32), o4.shape
    assert jnp.array_equal(o4, jnp.pad(x4, ((0, 0), (0, 0), (0, 1), (0, 15)))), \
        "bf16 mismatch vs reference"

    # 5) already-covered input: returned unchanged (no kernel launch).
    x5 = jax.random.normal(k5, (1, 2, 16, 32), jnp.float32)
    o5 = jax.block_until_ready(pad_corner(x5))
    assert o5.shape == x5.shape
    assert jnp.array_equal(o5, x5), "identity path mismatch"

    # 6) tiny-tensor fallback (default threshold): plain jnp.pad, same result.
    pad_fallback = AdaptivePaddingPallas(kernel_size=16, stride=16,
                                         padding='corner')
    o6 = jax.block_until_ready(pad_fallback(x1))
    assert jnp.array_equal(o6, o1), "fallback path mismatch"

    print("KERNEL_OK")
</pallas_src>

<mosaic_0001>
module attributes {stable_mosaic.version = 11 : i64} {
  func.func @kernel(%arg0: i32, %arg1: memref<8x255xf32, #tpu.memory_space<vmem>>, %arg2: memref<8x512xf32, #tpu.memory_space<vmem>>) attributes {dimension_semantics = [#tpu.dimension_semantics<parallel>], iteration_bounds = array<i64: 4>, scalar_prefetch = 0 : i64, scratch_operands = 0 : i64, tpu.core_type = #tpu.core_type<tc>, window_params = [{transform_indices = @transform_0, window_bounds = array<i64: 8, 255>}, {transform_indices = @transform_1, window_bounds = array<i64: 8, 512>}]} {
    %cst = arith.constant 0.000000e+00 : f32
    %0 = vector.broadcast %cst : f32 to vector<8x512xf32>
    %c0 = arith.constant 0 : index
    %c0_0 = arith.constant 0 : index
    %1 = vector.load %arg2[%c0, %c0_0] : memref<8x512xf32, #tpu.memory_space<vmem>>, vector<8x512xf32>
    tpu.vector_store %arg2[%c0, %c0_0], %0 {strides = array<i32>} : memref<8x512xf32, #tpu.memory_space<vmem>>, vector<8x512xf32>,
    %c0_1 = arith.constant 0 : index
    %c0_2 = arith.constant 0 : index
    %2 = vector.load %arg1[%c0_1, %c0_2] : memref<8x255xf32, #tpu.memory_space<vmem>>, vector<8x17xf32>
    %c0_3 = arith.constant 0 : index
    %c0_4 = arith.constant 0 : index
    %3 = vector.load %arg2[%c0_3, %c0_4] : memref<8x512xf32, #tpu.memory_space<vmem>>, vector<8x17xf32>
    tpu.vector_store %arg2[%c0_3, %c0_4], %2 {strides = array<i32>} : memref<8x512xf32, #tpu.memory_space<vmem>>, vector<8x17xf32>,
    %c0_5 = arith.constant 0 : index
    %c17 = arith.constant 17 : index
    %4 = vector.load %arg1[%c0_5, %c17] : memref<8x255xf32, #tpu.memory_space<vmem>>, vector<8x17xf32>
    %c0_6 = arith.constant 0 : index
    %c32 = arith.constant 32 : index
    %5 = vector.load %arg2[%c0_6, %c32] : memref<8x512xf32, #tpu.memory_space<vmem>>, vector<8x17xf32>
    tpu.vector_store %arg2[%c0_6, %c32], %4 {strides = array<i32>} : memref<8x512xf32, #tpu.memory_space<vmem>>, vector<8x17xf32>,
    %c0_7 = arith.constant 0 : index
    %c34 = arith.constant 34 : index
    %6 = vector.load %arg1[%c0_7, %c34] : memref<8x255xf32, #tpu.memory_space<vmem>>, vector<8x17xf32>
    %c0_8 = arith.constant 0 : index
    %c64 = arith.constant 64 : index
    %7 = vector.load %arg2[%c0_8, %c64] : memref<8x512xf32, #tpu.memory_space<vmem>>, vector<8x17xf32>
    tpu.vector_store %arg2[%c0_8, %c64], %6 {strides = array<i32>} : memref<8x512xf32, #tpu.memory_space<vmem>>, vector<8x17xf32>,
    %c0_9 = arith.constant 0 : index
    %c51 = arith.constant 51 : index
    %8 = vector.load %arg1[%c0_9, %c51] : memref<8x255xf32, #tpu.memory_space<vmem>>, vector<8x17xf32>
    %c0_10 = arith.constant 0 : index
    %c96 = arith.constant 96 : index
    %9 = vector.load %arg2[%c0_10, %c96] : memref<8x512xf32, #tpu.memory_space<vmem>>, vector<8x17xf32>
    tpu.vector_store %arg2[%c0_10, %c96], %8 {strides = array<i32>} : memref<8x512xf32, #tpu.memory_space<vmem>>, vector<8x17xf32>,
    %c0_11 = arith.constant 0 : index
    %c68 = arith.constant 68 : index
    %10 = vector.load %arg1[%c0_11, %c68] : memref<8x255xf32, #tpu.memory_space<vmem>>, vector<8x17xf32>
    %c0_12 = arith.constant 0 : index
    %c128 = arith.constant 128 : index
    %11 = vector.load %arg2[%c0_12, %c128] : memref<8x512xf32, #tpu.memory_space<vmem>>, vector<8x17xf32>
    tpu.vector_store %arg2[%c0_12, %c128], %10 {strides = array<i32>} : memref<8x512xf32, #tpu.memory_space<vmem>>, vector<8x17xf32>,
    %c0_13 = arith.constant 0 : index
    %c85 = arith.constant 85 : index
    %12 = vector.load %arg1[%c0_13, %c85] : memref<8x255xf32, #tpu.memory_space<vmem>>, vector<8x17xf32>
    %c0_14 = arith.constant 0 : index
    %c160 = arith.constant 160 : index
    %13 = vector.load %arg2[%c0_14, %c160] : memref<8x512xf32, #tpu.memory_space<vmem>>, vector<8x17xf32>
    tpu.vector_store %arg2[%c0_14, %c160], %12 {strides = array<i32>} : memref<8x512xf32, #tpu.memory_space<vmem>>, vector<8x17xf32>,
    %c0_15 = arith.constant 0 : index
    %c102 = arith.constant 102 : index
    %14 = vector.load %arg1[%c0_15, %c102] : memref<8x255xf32, #tpu.memory_space<vmem>>, vector<8x17xf32>
    %c0_16 = arith.constant 0 : index
    %c192 = arith.constant 192 : index
    %15 = vector.load %arg2[%c0_16, %c192] : memref<8x512xf32, #tpu.memory_space<vmem>>, vector<8x17xf32>
    tpu.vector_store %arg2[%c0_16, %c192], %14 {strides = array<i32>} : memref<8x512xf32, #tpu.memory_space<vmem>>, vector<8x17xf32>,
    %c0_17 = arith.constant 0 : index
    %c119 = arith.constant 119 : index
    %16 = vector.load %arg1[%c0_17, %c119] : memref<8x255xf32, #tpu.memory_space<vmem>>, vector<8x17xf32>
    %c0_18 = arith.constant 0 : index
    %c224 = arith.constant 224 : index
    %17 = vector.load %arg2[%c0_18, %c224] : memref<8x512xf32, #tpu.memory_space<vmem>>, vector<8x17xf32>
    tpu.vector_store %arg2[%c0_18, %c224], %16 {strides = array<i32>} : memref<8x512xf32, #tpu.memory_space<vmem>>, vector<8x17xf32>,
    %c0_19 = arith.constant 0 : index
    %c136 = arith.constant 136 : index
    %18 = vector.load %arg1[%c0_19, %c136] : memref<8x255xf32, #tpu.memory_space<vmem>>, vector<8x17xf32>
    %c0_20 = arith.constant 0 : index
    %c256 = arith.constant 256 : index
    %19 = vector.load %arg2[%c0_20, %c256] : memref<8x512xf32, #tpu.memory_space<vmem>>, vector<8x17xf32>
    tpu.vector_store %arg2[%c0_20, %c256], %18 {strides = array<i32>} : memref<8x512xf32, #tpu.memory_space<vmem>>, vector<8x17xf32>,
    %c0_21 = arith.constant 0 : index
    %c153 = arith.constant 153 : index
    %20 = vector.load %arg1[%c0_21, %c153] : memref<8x255xf32, #tpu.memory_space<vmem>>, vector<8x17xf32>
    %c0_22 = arith.constant 0 : index
    %c288 = arith.constant 288 : index
    %21 = vector.load %arg2[%c0_22, %c288] : memref<8x512xf32, #tpu.memory_space<vmem>>, vector<8x17xf32>
    tpu.vector_store %arg2[%c0_22, %c288], %20 {strides = array<i32>} : memref<8x512xf32, #tpu.memory_space<vmem>>, vector<8x17xf32>,
    %c0_23 = arith.constant 0 : index
    %c170 = arith.constant 170 : index
    %22 = vector.load %arg1[%c0_23, %c170] : memref<8x255xf32, #tpu.memory_space<vmem>>, vector<8x17xf32>
    %c0_24 = arith.constant 0 : index
    %c320 = arith.constant 320 : index
    %23 = vector.load %arg2[%c0_24, %c320] : memref<8x512xf32, #tpu.memory_space<vmem>>, vector<8x17xf32>
    tpu.vector_store %arg2[%c0_24, %c320], %22 {strides = array<i32>} : memref<8x512xf32, #tpu.memory_space<vmem>>, vector<8x17xf32>,
    %c0_25 = arith.constant 0 : index
    %c187 = arith.constant 187 : index
    %24 = vector.load %arg1[%c0_25, %c187] : memref<8x255xf32, #tpu.memory_space<vmem>>, vector<8x17xf32>
    %c0_26 = arith.constant 0 : index
    %c352 = arith.constant 352 : index
    %25 = vector.load %arg2[%c0_26, %c352] : memref<8x512xf32, #tpu.memory_space<vmem>>, vector<8x17xf32>
    tpu.vector_store %arg2[%c0_26, %c352], %24 {strides = array<i32>} : memref<8x512xf32, #tpu.memory_space<vmem>>, vector<8x17xf32>,
    %c0_27 = arith.constant 0 : index
    %c204 = arith.constant 204 : index
    %26 = vector.load %arg1[%c0_27, %c204] : memref<8x255xf32, #tpu.memory_space<vmem>>, vector<8x17xf32>
    %c0_28 = arith.constant 0 : index
    %c384 = arith.constant 384 : index
    %27 = vector.load %arg2[%c0_28, %c384] : memref<8x512xf32, #tpu.memory_space<vmem>>, vector<8x17xf32>
    tpu.vector_store %arg2[%c0_28, %c384], %26 {strides = array<i32>} : memref<8x512xf32, #tpu.memory_space<vmem>>, vector<8x17xf32>,
    %c0_29 = arith.constant 0 : index
    %c221 = arith.constant 221 : index
    %28 = vector.load %arg1[%c0_29, %c221] : memref<8x255xf32, #tpu.memory_space<vmem>>, vector<8x17xf32>
    %c0_30 = arith.constant 0 : index
    %c416 = arith.constant 416 : index
    %29 = vector.load %arg2[%c0_30, %c416] : memref<8x512xf32, #tpu.memory_space<vmem>>, vector<8x17xf32>
    tpu.vector_store %arg2[%c0_30, %c416], %28 {strides = array<i32>} : memref<8x512xf32, #tpu.memory_space<vmem>>, vector<8x17xf32>,
    %c0_31 = arith.constant 0 : index
    %c238 = arith.constant 238 : index
    %30 = vector.load %arg1[%c0_31, %c238] : memref<8x255xf32, #tpu.memory_space<vmem>>, vector<8x17xf32>
    %c0_32 = arith.constant 0 : index
    %c448 = arith.constant 448 : index
    %31 = vector.load %arg2[%c0_32, %c448] : memref<8x512xf32, #tpu.memory_space<vmem>>, vector<8x17xf32>
    tpu.vector_store %arg2[%c0_32, %c448], %30 {strides = array<i32>} : memref<8x512xf32, #tpu.memory_space<vmem>>, vector<8x17xf32>,
    return
  }
  func.func @transform_0(%arg0: i32) -> (i32, i32) {
    %c0_i32 = arith.constant 0 : i32
    %c0_i32_0 = arith.constant 0 : i32
    return %arg0, %c0_i32 : i32, i32
  }
  func.func @transform_1(%arg0: i32) -> (i32, i32) {
    %c0_i32 = arith.constant 0 : i32
    %c0_i32_0 = arith.constant 0 : i32
    return %arg0, %c0_i32 : i32, i32
  }
}

</mosaic_0001>

<llo_original>
// kernel: tpu_custom_call.1
$region0: #{tpu_custom_call.1}
  #allocation0 [shape = 'u32[]', space=smem, size = 0x4, offset = 0x4, fixed_abs, tag = 'smem constant byte address 0x4 - core index']
  #allocation1 [shape = 'u32[144,128]{1,0:T(1,128)}', space=vmem, size = 0x12000, scoped, tag = 'internal scratch']
  %s0 = inlined_call_operand.hbm [shape: f32[32,255], index: 0, kind: input, shape index: {}]
  %s1 = inlined_call_operand.hbm [shape: f32[32,512], index: 1, kind: output, shape index: {}]
  %s2 = sld [smem:[#allocation0]]
  $region41: #{tpu_custom_call.1} parent=0
    _
  %s4 = ssub.s32 1, %s2
  %s5 = scalar_select 0, %s4, %s2
  $region1: #{tpu_custom_call.1} parent=0
    #allocation2 [shape = 'u8[16384]{0}', space=vmem, size = 0x4000, scoped, tag = 'input window, operand 0']
    #allocation3 [shape = 's32[2]{0}', space=sflag, size = 0x8, scoped, tag = 'scoped memory for tpu_custom_call.1']
    #allocation4 [shape = 's32[2]{0}', space=sflag, size = 0x8, scoped, tag = 'scoped memory for tpu_custom_call.1']
    #allocation5 [shape = 'u8[32768]{0}', space=vmem, size = 0x8000, scoped, tag = 'output window, operand 0']
    %6 = vsyncpa [#allocation3], 0
    %s7 = scalar_lea.sflag [#allocation3], 1
    %8 = vsyncpa %s7, 0
    %9 = vsyncpa [#allocation4], 0
    %s10 = scalar_lea.sflag [#allocation4], 1
    %11 = vsyncpa %s10, 0
    loop: start=0, step=1, limit=6
    $region2: #{tpu_custom_call.1} parent=1 // loop_pre_header
      _
    $region3: #{tpu_custom_call.1} parent=1 // loop_header
      %s13 = sphi 0, %s17
      %p14 = scmp.ge.s32.totalorder %s13, 6
      %s23 = sphi 0, %s25
      %s26 = sphi 0, %s23
      %s27 = sphi 0, %s26
      %s43 = sphi 0, %s27
      %s49 = sphi 0, %s51
      %s52 = sphi 0, %s49
      %s53 = sphi 0, %s52
      %s69 = sphi 0, %s53
    $region4: #{tpu_custom_call.1} parent=1 // loop_header_branch
      %16 = sbr.rel (%p14) target = $region8
    $region5: #{tpu_custom_call.1} parent=1 // loop_body
      %s18 = ssub.s32 %s13, 1
      %s19 = ssub.s32 %s13, 2
      %s20 = sadd.s32 %s13, 1
      %s21 = ssub.s32 %s13, %s20
      %p22 = scmp.eq.s32.totalorder %s21, 0
      %s24 = sadd.s32 %s23, 1
      %s25 = scalar_select %p22, %s23, %s24
      %p28 = pneg %p22
      %p29 = scmp.eq.s32.totalorder %s13, 3
      %p30 = por %p28, %p29
      %p31 = scmp.ne.s32.totalorder %s23, %s26
      %p32 = scmp.eq.s32.totalorder %s13, 0
      %p33 = por %p31, %p32
      %p34 = scmp.ne.s32.totalorder %s23, %s26
      %p35 = scmp.eq.s32.totalorder %s18, 3
      %p36 = por %p34, %p35
      %p37 = scmp.ne.s32.totalorder %s26, %s27
      %p38 = scmp.eq.s32.totalorder %s18, 0
      %p39 = por %p37, %p38
      %p40 = scmp.ne.s32.totalorder %s26, %s27
      %p41 = scmp.eq.s32.totalorder %s19, 3
      %p42 = por %p40, %p41
      %p44 = scmp.ne.s32.totalorder %s27, %s43
      %p45 = scmp.eq.s32.totalorder %s19, 0
      %p46 = por %p44, %p45
      %s47 = ssub.s32 %s13, %s20
      %p48 = scmp.eq.s32.totalorder %s47, 0
      %s50 = sadd.s32 %s49, 1
      %s51 = scalar_select %p48, %s49, %s50
      %p54 = pneg %p48
      %p55 = scmp.eq.s32.totalorder %s13, 3
      %p56 = por %p54, %p55
      %p57 = scmp.ne.s32.totalorder %s49, %s52
      %p58 = scmp.eq.s32.totalorder %s13, 0
      %p59 = por %p57, %p58
      %p60 = scmp.ne.s32.totalorder %s49, %s52
      %p61 = scmp.eq.s32.totalorder %s18, 3
      %p62 = por %p60, %p61
      %p63 = scmp.ne.s32.totalorder %s52, %s53
      %p64 = scmp.eq.s32.totalorder %s18, 0
      %p65 = por %p63, %p64
      %p66 = scmp.ne.s32.totalorder %s52, %s53
      %p67 = scmp.eq.s32.totalorder %s19, 3
      %p68 = por %p66, %p67
      %p70 = scmp.ne.s32.totalorder %s53, %s69
      %p71 = scmp.eq.s32.totalorder %s19, 0
      %p72 = por %p70, %p71
      %p73 = scmp.le.s32.totalorder 1, %s13
      %p74 = scmp.lt.s32.totalorder %s13, 5
      %p75 = pnand %p73, %p74
      %p76 = pneg %p75
      // Predicated region
      $region9: #{tpu_custom_call.1} parent=5 // pred_check
        _
      $region10: #{tpu_custom_call.1} parent=5 // pred_check_branch
        %78 = sbr.rel (%p75) target = $region12
      $region11: #{tpu_custom_call.1} parent=5 // pred_region
        %s79 = ssub.s32 %s13, 1
      $region12: #{tpu_custom_call.1} parent=5 // pred_fallthru
        _
      %p80 = scmp.lt.s32.totalorder %s13, 4
      // Predicated region
      $region13: #{tpu_custom_call.1} parent=5 // pred_check
        %p81 = pneg %p80
      $region14: #{tpu_custom_call.1} parent=5 // pred_check_branch
        %83 = sbr.rel (%p81) target = $region16
      $region15: #{tpu_custom_call.1} parent=5 // pred_region
        // Predicated region
        $region17: #{tpu_custom_call.1} parent=15 // pred_check
          %p84 = pneg %p33
        $region18: #{tpu_custom_call.1} parent=15 // pred_check_branch
          %86 = sbr.rel (%p84) target = $region20
        $region19: #{tpu_custom_call.1} parent=15 // pred_region
          %s87 = sand.u32 %s23, 1
          %s88 = scalar_lea.sflag [#allocation3], %s87
          %s89 = sand.u32 %s23, 1
          %s90 = smul.addr %s89, 16
          %s91 = scalar_lea.vmem [#allocation2], %s90
          %s93 = ssub.s32 256, 256
          %94 = vsyncadd %s88, %s93
          %s95 = smul.addr %s13, 2
          %s96 = smul.addr %s95, 128
          %s97 = scalar_lea.hbm %s0, %s96
          %s99 = sshll.u32 %s91, 4
          %s100 = int_to_ptr.vmem [resolvable:$true] %s99
          %102 = dma.hbm_to_vmem [thread:$0]  %s97, 256, %s100, %s88
        $region20: #{tpu_custom_call.1} parent=15 // pred_fallthru
          _
      $region16: #{tpu_custom_call.1} parent=5 // pred_fallthru
        _
      %p103 = scmp.le.s32.totalorder 1, %s13
      %p104 = scmp.lt.s32.totalorder %s13, 5
      %p105 = pnand %p103, %p104
      %p106 = pneg %p105
      // Predicated region
      $region21: #{tpu_custom_call.1} parent=5 // pred_check
        _
      $region22: #{tpu_custom_call.1} parent=5 // pred_check_branch
        %108 = sbr.rel (%p105) target = $region24
      $region23: #{tpu_custom_call.1} parent=5 // pred_region
        %s109 = ssub.s32 %s13, 1
        %s110 = sand.u32 %s26, 1
        %s111 = scalar_lea.sflag [#allocation3], %s110
        %s112 = sand.u32 %s26, 1
        %s113 = smul.addr %s112, 16
        %s114 = scalar_lea.vmem [#allocation2], %s113
        // Predicated region
        $region25: #{tpu_custom_call.1} parent=23 // pred_check
          %p115 = pneg %p39
        $region26: #{tpu_custom_call.1} parent=23 // pred_check_branch
          %117 = sbr.rel (%p115) target = $region28
        $region27: #{tpu_custom_call.1} parent=23 // pred_region
          %118 = dma.done %s111, 256
        $region28: #{tpu_custom_call.1} parent=23 // pred_fallthru
          _
        %s119 = sand.u32 %s26, 1
        %s120 = scalar_lea.sflag [#allocation3], %s119
        %s121 = sand.u32 %s26, 1
        %s122 = smul.addr %s121, 16
        %s123 = scalar_lea.vmem [#allocation2], %s122
        %p124 = pneg %p39
        %p125 = pneg %p36
        %p126 = pneg %p65
        %p127 = pneg %p62
        %s128 = sand.u32 %s52, 1
        %s129 = scalar_lea.sflag [#allocation4], %s128
        %s130 = sand.u32 %s52, 1
        %s131 = smul.addr %s130, 32
        %s132 = scalar_lea.vmem [#allocation5], %s131
        %133 = vst [vmem:[%s132] sm:$0xff] 0.0
        %134 = vst [vmem:[%s132 + $0x8] sm:$0xff] 0.0
        %135 = vst [vmem:[%s132 + $0x10] sm:$0xff] 0.0
        %136 = vst [vmem:[%s132 + $0x18] sm:$0xff] 0.0
        %v137 = vld [vmem:[%s114] sm:$0xff]
        %vm138 = vcmask 138240
        %139 = vst.msk [vmem:[%s132] sm:$0xff] %vm138, %v137
        %v140 = vld [vmem:[%s114] sm:$0xff]
        %142 = vrot.lane.b32.xlu0 %v140, 15
        %v143 = vpop.permute.xlu0 %142
        %vm145 = vcmask 400640
        %146 = vst.msk [vmem:[%s132] sm:$0xff] %vm145, %v143
        %v147 = vld [vmem:[%s114] sm:$0xff]
        %149 = vrot.lane.b32.xlu0 %v147, 30
        %v150 = vpop.permute.xlu0 %149
        %vm152 = vcmask 663040
        %153 = vst.msk [vmem:[%s132] sm:$0xff] %vm152, %v150
        %v154 = vld [vmem:[%s114] sm:$0xff]
        %156 = vrot.lane.b32.xlu0 %v154, 45
        %v157 = vpop.permute.xlu0 %156
        %vm159 = vcmask 925440
        %160 = vst.msk [vmem:[%s132] sm:$0xff] %vm159, %v157
        %v161 = vld [vmem:[%s114] sm:$0xff]
        %163 = vrot.lane.b32.xlu0 %v161, 60
        %v164 = vpop.permute.xlu0 %163
        %166 = vst.msk [vmem:[%s132 + $0x8] sm:$0xff] %vm138, %v164
        %v167 = vld [vmem:[%s114] sm:$0xff]
        %169 = vrot.lane.b32.xlu0 %v167, 75
        %v170 = vpop.permute.xlu0 %169
        %172 = vst.msk [vmem:[%s132 + $0x8] sm:$0xff] %vm145, %v170
        %v173 = vld [vmem:[%s114] sm:$0xff]
        %175 = vrot.lane.b32.xlu0 %v173, 90
        %v176 = vpop.permute.xlu0 %175
        %178 = vst.msk [vmem:[%s132 + $0x8] sm:$0xff] %vm152, %v176
        %v179 = vld [vmem:[%s114] sm:$0xff]
        %v180 = vld [vmem:[%s114 + $0x8] sm:$0xff]
        %183 = vrot.lane.b32.xlu0 %v179, 105
        %v184 = vpop.permute.xlu0 %183
        %185 = vrot.lane.b32.xlu0 %v180, 105
        %v186 = vpop.permute.xlu0 %185
        %vm187 = vcmask 859136
        %v188 = vsel %vm187, %v184, %v186
        %190 = vst.msk [vmem:[%s132 + $0x8] sm:$0xff] %vm159, %v188
        %v191 = vld [vmem:[%s114 + $0x8] sm:$0xff]
        %193 = vrot.lane.b32.xlu0 %v191, 120
        %v194 = vpop.permute.xlu0 %193
        %196 = vst.msk [vmem:[%s132 + $0x10] sm:$0xff] %vm138, %v194
        %v197 = vld [vmem:[%s114 + $0x8] sm:$0xff]
        %199 = vrot.lane.b32.xlu0 %v197, 7
        %v200 = vpop.permute.xlu0 %199
        %202 = vst.msk [vmem:[%s132 + $0x10] sm:$0xff] %vm145, %v200
        %v203 = vld [vmem:[%s114 + $0x8] sm:$0xff]
        %205 = vrot.lane.b32.xlu0 %v203, 22
        %v206 = vpop.permute.xlu0 %205
        %208 = vst.msk [vmem:[%s132 + $0x10] sm:$0xff] %vm152, %v206
        %v209 = vld [vmem:[%s114 + $0x8] sm:$0xff]
        %211 = vrot.lane.b32.xlu0 %v209, 37
        %v212 = vpop.permute.xlu0 %211
        %214 = vst.msk [vmem:[%s132 + $0x10] sm:$0xff] %vm159, %v212
        %v215 = vld [vmem:[%s114 + $0x8] sm:$0xff]
        %217 = vrot.lane.b32.xlu0 %v215, 52
        %v218 = vpop.permute.xlu0 %217
        %220 = vst.msk [vmem:[%s132 + $0x18] sm:$0xff] %vm138, %v218
        %v221 = vld [vmem:[%s114 + $0x8] sm:$0xff]
        %223 = vrot.lane.b32.xlu0 %v221, 67
        %v224 = vpop.permute.xlu0 %223
        %226 = vst.msk [vmem:[%s132 + $0x18] sm:$0xff] %vm145, %v224
        %v227 = vld [vmem:[%s114 + $0x8] sm:$0xff]
        %229 = vrot.lane.b32.xlu0 %v227, 82
        %v230 = vpop.permute.xlu0 %229
        %232 = vst.msk [vmem:[%s132 + $0x18] sm:$0xff] %vm152, %v230
        %s233 = sand.u32 %s52, 1
        %s234 = scalar_lea.sflag [#allocation4], %s233
        %s235 = sand.u32 %s52, 1
        %s236 = smul.addr %s235, 32
        %s237 = scalar_lea.vmem [#allocation5], %s236
        // Predicated region
        $region29: #{tpu_custom_call.1} parent=23 // pred_check
          %p238 = pneg %p62
        $region30: #{tpu_custom_call.1} parent=23 // pred_check_branch
          %240 = sbr.rel (%p238) target = $region32
        $region31: #{tpu_custom_call.1} parent=23 // pred_region
          %s242 = ssub.s32 512, 512
          %243 = vsyncadd %s234, %s242
          %s244 = smul.addr %s18, 4
          %s245 = smul.addr %s244, 128
          %s246 = scalar_lea.hbm %s1, %s245
          %s248 = sshll.u32 %s237, 4
          %s249 = int_to_ptr.vmem [resolvable:$true] %s248
          %251 = dma.vmem_to_hbm [thread:$0]  %s249, 512, %s246, %s234
        $region32: #{tpu_custom_call.1} parent=23 // pred_fallthru
          _
      $region24: #{tpu_custom_call.1} parent=5 // pred_fallthru
        _
      %p252 = scmp.le.s32.totalorder 2, %s13
      // Predicated region
      $region33: #{tpu_custom_call.1} parent=5 // pred_check
        %p253 = pneg %p252
      $region34: #{tpu_custom_call.1} parent=5 // pred_check_branch
        %255 = sbr.rel (%p253) target = $region36
      $region35: #{tpu_custom_call.1} parent=5 // pred_region
        %s256 = ssub.s32 %s13, 2
        // Predicated region
        $region37: #{tpu_custom_call.1} parent=35 // pred_check
          %p257 = pneg %p68
        $region38: #{tpu_custom_call.1} parent=35 // pred_check_branch
          %259 = sbr.rel (%p257) target = $region40
        $region39: #{tpu_custom_call.1} parent=35 // pred_region
          %s260 = sand.u32 %s53, 1
          %s261 = scalar_lea.sflag [#allocation4], %s260
          %s262 = sand.u32 %s53, 1
          %s263 = smul.addr %s262, 32
          %s264 = scalar_lea.vmem [#allocation5], %s263
          %265 = dma.done %s261, 512
        $region40: #{tpu_custom_call.1} parent=35 // pred_fallthru
          _
      $region36: #{tpu_custom_call.1} parent=5 // pred_fallthru
        _
    $region6: #{tpu_custom_call.1} parent=1 // loop_footer
      %s17 = sadd.s32 1, %s13
    $region7: #{tpu_custom_call.1} parent=1 // loop_footer_branch
      %12 = sbr.rel target = $region3
    $region8: #{tpu_custom_call.1} parent=1 // loop_exit
      _
    %266 = vsyncpa [#allocation3], 1
    %s267 = scalar_lea.sflag [#allocation3], 1
    %268 = vsyncpa %s267, 1
    %269 = vsyncpa [#allocation4], 1
    %s270 = scalar_lea.sflag [#allocation4], 1
    %271 = vsyncpa %s270, 1

</llo_original>
